<compile_context>
chip_gen: v7x
topology: tpu7x:2x2x1
jax: 0.10.0
libtpu: 0.0.40
codegen_flags: <defaults>
</compile_context>

<pallas_src>
import jax
import jax.numpy as jnp
from jax.experimental import pallas as pl
from jax.experimental.pallas import tpu as pltpu


def _round_up(x, m):
    return ((x + m - 1) // m) * m


def _largest_divisor_leq(n, cap):
    cap = max(1, min(n, cap))
    for p in range(cap, 0, -1):
        if n % p == 0:
            return p
    return 1


def _laplacian(d):
    """5-point Laplacian stencil with zero boundary, per plane.

    d: (P, H, W) float32.  Shifts act on axes 1 and 2 only.
    """
    P, H, W = d.shape
    zrow = jnp.zeros((P, 1, W), dtype=d.dtype)
    zcol = jnp.zeros((P, H, 1), dtype=d.dtype)
    up = jnp.concatenate([zrow, d[:, :-1, :]], axis=1)     # d[p, i-1, j]
    down = jnp.concatenate([d[:, 1:, :], zrow], axis=1)    # d[p, i+1, j]
    left = jnp.concatenate([zcol, d[:, :, :-1]], axis=2)   # d[p, i, j-1]
    right = jnp.concatenate([d[:, :, 1:], zcol], axis=2)   # d[p, i, j+1]
    return 4.0 * d - up - down - left - right


def _lap_l1_kernel(real_ref, gen_ref, out_ref):
    # real_ref / gen_ref: (P, H, W) VMEM input tiles.
    # out_ref:            (1, 1) f32 partial sum, resident across grid axis 1.
    s = pl.program_id(1)

    @pl.when(s == 0)
    def _():
        out_ref[...] = jnp.zeros_like(out_ref)

    # Laplacian is linear: run the stencil once on the difference.
    d = gen_ref[...].astype(jnp.float32) - real_ref[...].astype(jnp.float32)
    out_ref[...] += jnp.sum(jnp.abs(_laplacian(d)))


def laplacian_loss(real_images, generated_images,
                   *, vmem_budget_bytes=20 * 1024 * 1024):
    """real_images, generated_images: [B, C, H, W] (NCHW). Returns scalar f32."""
    assert real_images.shape == generated_images.shape
    assert real_images.dtype == generated_images.dtype
    B, C, H, W = real_images.shape
    n_planes = B * C

    # Flatten batch & channel (free: contiguous reshape); keep HBM dtype.
    real_flat = real_images.reshape(n_planes, H, W)
    gen_flat = generated_images.reshape(n_planes, H, W)

    itemsize = jnp.dtype(real_flat.dtype).itemsize

    # Real VMEM footprint of one plane (lanes padded to 128, sublanes to the
    # dtype packing) for input buffers and for the f32 stencil temporaries.
    lanes = _round_up(W, 128)
    sub_in = 8 * max(1, 4 // itemsize)           # 8 for f32, 16 for bf16, ...
    plane_in_bytes = _round_up(H, sub_in) * lanes * itemsize
    plane_f32_bytes = _round_up(H, 8) * lanes * 4
    # 2 inputs x 2 pipeline buffers + ~6 f32-sized temporaries in the stencil.
    per_plane_cost = 4 * plane_in_bytes + 6 * plane_f32_bytes
    cap = max(1, vmem_budget_bytes // per_plane_cost)

    # Planes per block: largest divisor of n_planes within the budget, so the
    # grid covers the arrays exactly (no padding / masking / OOB blocks).
    P = _largest_divisor_leq(n_planes, cap)
    n_blocks = n_planes // P

    # Split the block loop into independent partial sums; the leading grid
    # axis is "parallel" so a 2-TensorCore chip (v7x) shards it.
    n_groups = 2 if (n_blocks >= 2 and n_blocks % 2 == 0) else 1
    S = n_blocks // n_groups

    plane_index = lambda g, s: (g * S + s, 0, 0)

    cost = pl.CostEstimate(
        flops=8 * n_planes * H * W,
        transcendentals=0,
        bytes_accessed=2 * n_planes * H * W * itemsize + 4 * n_groups,
    )

    partials = pl.pallas_call(
        _lap_l1_kernel,
        out_shape=jax.ShapeDtypeStruct((n_groups, 1), jnp.float32),
        grid_spec=pltpu.PrefetchScalarGridSpec(
            num_scalar_prefetch=0,
            grid=(n_groups, S),
            in_specs=[
                pl.BlockSpec((P, H, W), plane_index),
                pl.BlockSpec((P, H, W), plane_index),
            ],
            out_specs=pl.BlockSpec((1, 1), lambda g, s: (g, 0)),
        ),
        compiler_params=pltpu.CompilerParams(
            dimension_semantics=("parallel", "arbitrary"),
            vmem_limit_bytes=32 * 1024 * 1024,
        ),
        cost_estimate=cost,
    )(real_flat, gen_flat)

    # F.l1_loss(reduction='mean'): divide by the element count.
    return jnp.sum(partials) / jnp.float32(n_planes * H * W)


def _reference_loss(real_images, generated_images):
    """Pure-JAX reference for sanity checking."""
    def lap(x):  # x: [B, C, H, W]
        xf = x.astype(jnp.float32)
        xp = jnp.pad(xf, ((0, 0), (0, 0), (1, 1), (1, 1)))
        return (4.0 * xf
                - xp[:, :, :-2, 1:-1] - xp[:, :, 2:, 1:-1]
                - xp[:, :, 1:-1, :-2] - xp[:, :, 1:-1, 2:])
    return jnp.mean(jnp.abs(lap(generated_images) - lap(real_images)))


if __name__ == "__main__":
    key = jax.random.PRNGKey(0)
    k1, k2 = jax.random.split(key)
    B, C, H, W = 2, 3, 16, 16  # RGB images as the module expects
    real = jax.random.uniform(k1, (B, C, H, W), dtype=jnp.float32)
    gen = jax.random.uniform(k2, (B, C, H, W), dtype=jnp.float32)

    loss = jax.block_until_ready(laplacian_loss(real, gen))
    ref = jax.block_until_ready(_reference_loss(real, gen))

    assert jnp.allclose(loss, ref, rtol=1e-5, atol=1e-5), (loss, ref)
    print("KERNEL_OK")
</pallas_src>

<mosaic_0001>
module attributes {stable_mosaic.version = 11 : i64} {
  func.func @_lap_l1_kernel(%arg0: i32, %arg1: i32, %arg2: memref<6x16x16xf32, #tpu.memory_space<vmem>>, %arg3: memref<6x16x16xf32, #tpu.memory_space<vmem>>, %arg4: memref<1x1xf32, #tpu.memory_space<vmem>>) attributes {dimension_semantics = [#tpu.dimension_semantics<parallel>, #tpu.dimension_semantics<arbitrary>], iteration_bounds = array<i64: 1, 1>, scalar_prefetch = 0 : i64, scratch_operands = 0 : i64, tpu.core_type = #tpu.core_type<tc>, window_params = [{transform_indices = @transform_0, window_bounds = array<i64: 6, 16, 16>}, {transform_indices = @transform_1, window_bounds = array<i64: 6, 16, 16>}, {transform_indices = @transform_2, window_bounds = array<i64: 1, 1>}]} {
    %c0_i32 = arith.constant 0 : i32
    %0 = arith.cmpi eq, %arg1, %c0_i32 : i32
    %1 = arith.extui %0 : i1 to i32
    %c0_i32_0 = arith.constant 0 : i32
    %2 = arith.cmpi ne, %1, %c0_i32_0 : i32
    scf.if %2 {
      %cst_13 = arith.constant 0.000000e+00 : f32
      %31 = vector.broadcast %cst_13 : f32 to vector<1x1xf32>
      %c0_14 = arith.constant 0 : index
      %c0_15 = arith.constant 0 : index
      %32 = vector.load %arg4[%c0_14, %c0_15] : memref<1x1xf32, #tpu.memory_space<vmem>>, vector<1x1xf32>
      tpu.vector_store %arg4[%c0_14, %c0_15], %31 {strides = array<i32>} : memref<1x1xf32, #tpu.memory_space<vmem>>, vector<1x1xf32>,
    } else {
    }
    %c0 = arith.constant 0 : index
    %c0_1 = arith.constant 0 : index
    %c0_2 = arith.constant 0 : index
    %3 = vector.load %arg3[%c0, %c0_1, %c0_2] : memref<6x16x16xf32, #tpu.memory_space<vmem>>, vector<6x16x16xf32>
    %c0_3 = arith.constant 0 : index
    %c0_4 = arith.constant 0 : index
    %c0_5 = arith.constant 0 : index
    %4 = vector.load %arg2[%c0_3, %c0_4, %c0_5] : memref<6x16x16xf32, #tpu.memory_space<vmem>>, vector<6x16x16xf32>
    %5 = arith.subf %3, %4 : vector<6x16x16xf32>
    %c0_6 = arith.constant 0 : index
    %c0_7 = arith.constant 0 : index
    %6 = vector.load %arg4[%c0_6, %c0_7] : memref<1x1xf32, #tpu.memory_space<vmem>>, vector<1x1xf32>
    %cst = arith.constant 0.000000e+00 : f32
    %7 = vector.broadcast %cst : f32 to vector<6x1x16xf32>
    %cst_8 = arith.constant 0.000000e+00 : f32
    %8 = vector.broadcast %cst_8 : f32 to vector<6x16x1xf32>
    %9 = vector.extract_strided_slice %5 {offsets = [0, 0, 0], sizes = [6, 15, 16], strides = [1, 1, 1]} : vector<6x16x16xf32> to vector<6x15x16xf32>
    %10 = tpu.concatenate %7, %9 in 1 : vector<6x1x16xf32>, vector<6x15x16xf32> -> vector<6x16x16xf32>
    %11 = vector.extract_strided_slice %5 {offsets = [0, 1, 0], sizes = [6, 15, 16], strides = [1, 1, 1]} : vector<6x16x16xf32> to vector<6x15x16xf32>
    %12 = tpu.concatenate %11, %7 in 1 : vector<6x15x16xf32>, vector<6x1x16xf32> -> vector<6x16x16xf32>
    %13 = vector.extract_strided_slice %5 {offsets = [0, 0, 0], sizes = [6, 16, 15], strides = [1, 1, 1]} : vector<6x16x16xf32> to vector<6x16x15xf32>
    %14 = tpu.concatenate %8, %13 in 2 : vector<6x16x1xf32>, vector<6x16x15xf32> -> vector<6x16x16xf32>
    %15 = vector.extract_strided_slice %5 {offsets = [0, 0, 1], sizes = [6, 16, 15], strides = [1, 1, 1]} : vector<6x16x16xf32> to vector<6x16x15xf32>
    %16 = tpu.concatenate %15, %8 in 2 : vector<6x16x15xf32>, vector<6x16x1xf32> -> vector<6x16x16xf32>
    %cst_9 = arith.constant 4.000000e+00 : f32
    %17 = vector.broadcast %cst_9 : f32 to vector<6x16x16xf32>
    %18 = arith.mulf %17, %5 : vector<6x16x16xf32>
    %19 = arith.subf %18, %10 : vector<6x16x16xf32>
    %20 = arith.subf %19, %12 : vector<6x16x16xf32>
    %21 = arith.subf %20, %14 : vector<6x16x16xf32>
    %22 = arith.subf %21, %16 : vector<6x16x16xf32>
    %23 = math.absf %22 : vector<6x16x16xf32>
    %24 = vector.shape_cast %23 : vector<6x16x16xf32> to vector<1x6x16x16xf32>
    %cst_10 = arith.constant dense<0.000000e+00> : vector<1xf32>
    %25 = vector.multi_reduction <add>, %24, %cst_10 [1, 2, 3] : vector<1x6x16x16xf32> to vector<1xf32>
    %26 = vector.shape_cast %25 : vector<1xf32> to vector<1x1x1x1xf32>
    %27 = vector.extract %26[0, 0, 0, 0] : f32 from vector<1x1x1x1xf32>
    %28 = vector.broadcast %27 : f32 to vector<1x1xf32>
    %29 = arith.addf %6, %28 : vector<1x1xf32>
    %c0_11 = arith.constant 0 : index
    %c0_12 = arith.constant 0 : index
    %30 = vector.load %arg4[%c0_11, %c0_12] : memref<1x1xf32, #tpu.memory_space<vmem>>, vector<1x1xf32>
    tpu.vector_store %arg4[%c0_11, %c0_12], %29 {strides = array<i32>} : memref<1x1xf32, #tpu.memory_space<vmem>>, vector<1x1xf32>,
    return
  }
  func.func @transform_0(%arg0: i32, %arg1: i32) -> (i32, i32, i32) {
    %c1_i32 = arith.constant 1 : i32
    %0 = arith.muli %arg0, %c1_i32 : i32
    %1 = arith.addi %0, %arg1 : i32
    %c0_i32 = arith.constant 0 : i32
    %c0_i32_0 = arith.constant 0 : i32
    %c0_i32_1 = arith.constant 0 : i32
    return %1, %c0_i32, %c0_i32_0 : i32, i32, i32
  }
  func.func @transform_1(%arg0: i32, %arg1: i32) -> (i32, i32, i32) {
    %c1_i32 = arith.constant 1 : i32
    %0 = arith.muli %arg0, %c1_i32 : i32
    %1 = arith.addi %0, %arg1 : i32
    %c0_i32 = arith.constant 0 : i32
    %c0_i32_0 = arith.constant 0 : i32
    %c0_i32_1 = arith.constant 0 : i32
    return %1, %c0_i32, %c0_i32_0 : i32, i32, i32
  }
  func.func @transform_2(%arg0: i32, %arg1: i32) -> (i32, i32) {
    %c0_i32 = arith.constant 0 : i32
    %c0_i32_0 = arith.constant 0 : i32
    return %arg0, %c0_i32 : i32, i32
  }
}

</mosaic_0001>

<llo_original>
// kernel: tpu_custom_call.1
$region0: #{tpu_custom_call.1}
  #allocation0 [shape = 'u32[]', space=smem, size = 0x4, offset = 0x4, fixed_abs, tag = 'smem constant byte address 0x4 - core index']
  #allocation1 [shape = 'u32[144,128]{1,0:T(1,128)}', space=vmem, size = 0x12000, scoped, tag = 'internal scratch']
  %s0 = inlined_call_operand.hbm [shape: f32[6,16,16], index: 0, kind: input, shape index: {}]
  %s1 = inlined_call_operand.hbm [shape: f32[6,16,16], index: 1, kind: input, shape index: {}]
  %s2 = inlined_call_operand.hbm [shape: f32[1,1], index: 2, kind: output, shape index: {}]
  %s3 = sld [smem:[#allocation0]]
  $region30: #{tpu_custom_call.1} parent=0
    _
  %s5 = ssub.s32 1, %s3
  %s6 = scalar_select 0, %s5, %s3
  $region1: #{tpu_custom_call.1} parent=0
    #allocation2 [shape = 'u8[49152]{0}', space=vmem, size = 0xc000, scoped, tag = 'input window, operand 0, single buffered']
    #allocation3 [shape = 's32[1]{0}', space=sflag, size = 0x4, scoped, tag = 'scoped memory for tpu_custom_call.1']
    #allocation4 [shape = 's32[1]{0}', space=sflag, size = 0x4, scoped, tag = 'scoped memory for tpu_custom_call.1']
    #allocation5 [shape = 'u8[49152]{0}', space=vmem, size = 0xc000, scoped, tag = 'input window, operand 1, single buffered']
    #allocation6 [shape = 's32[1]{0}', space=sflag, size = 0x4, scoped, tag = 'scoped memory for tpu_custom_call.1']
    #allocation7 [shape = 'u8[512]{0}', space=vmem, size = 0x400, scoped, tag = 'output window, operand 0, single buffered']
    %7 = vsyncpa [#allocation3], 0
    %8 = vsyncpa [#allocation6], 0
    %9 = vsyncpa [#allocation4], 0
    // Predicated region
    $region2: #{tpu_custom_call.1} parent=1 // pred_check
      _
    $region3: #{tpu_custom_call.1} parent=1 // pred_check_branch
      %11 = sbr.rel (0) target = $region5
    $region4: #{tpu_custom_call.1} parent=1 // pred_region
      %s12 = sadd.s32 0, 0
      %s13 = smul.u32 6, %s12
      %s15 = ssub.s32 1536, 1536
      %16 = vsyncadd [#allocation3], %s15
      %s17 = smul.addr %s13, 2
      %s18 = smul.addr %s17, 128
      %s19 = scalar_lea.hbm %s0, %s18
      %s20 = sshll.u32 [#allocation2], 4
      %s21 = int_to_ptr.vmem [resolvable:$true] %s20
      %26 = dma.hbm_to_vmem [thread:$0]  %s19, 1536, %s21, [#allocation3], 128, 128, 8
    $region5: #{tpu_custom_call.1} parent=1 // pred_fallthru
      _
    // Predicated region
    $region6: #{tpu_custom_call.1} parent=1 // pred_check
      _
    $region7: #{tpu_custom_call.1} parent=1 // pred_check_branch
      %28 = sbr.rel (0) target = $region9
    $region8: #{tpu_custom_call.1} parent=1 // pred_region
      %s29 = sadd.s32 0, 0
      %s30 = smul.u32 6, %s29
      %s32 = ssub.s32 1536, 1536
      %33 = vsyncadd [#allocation6], %s32
      %s34 = smul.addr %s30, 2
      %s35 = smul.addr %s34, 128
      %s36 = scalar_lea.hbm %s1, %s35
      %s37 = sshll.u32 [#allocation5], 4
      %s38 = int_to_ptr.vmem [resolvable:$true] %s37
      %43 = dma.hbm_to_vmem [thread:$0]  %s36, 1536, %s38, [#allocation6], 128, 128, 8
    $region9: #{tpu_custom_call.1} parent=1 // pred_fallthru
      _
    // Predicated region
    $region10: #{tpu_custom_call.1} parent=1 // pred_check
      _
    $region11: #{tpu_custom_call.1} parent=1 // pred_check_branch
      %45 = sbr.rel (0) target = $region13
    $region12: #{tpu_custom_call.1} parent=1 // pred_region
      %46 = dma.done [#allocation3], 1536
    $region13: #{tpu_custom_call.1} parent=1 // pred_fallthru
      _
    // Predicated region
    $region14: #{tpu_custom_call.1} parent=1 // pred_check
      _
    $region15: #{tpu_custom_call.1} parent=1 // pred_check_branch
      %48 = sbr.rel (0) target = $region17
    $region16: #{tpu_custom_call.1} parent=1 // pred_region
      %49 = dma.done [#allocation6], 1536
    $region17: #{tpu_custom_call.1} parent=1 // pred_fallthru
      _
    %s50 = sadd.s32 0, 0
    %s51 = smul.u32 6, %s50
    %s52 = sadd.s32 0, 0
    %s53 = smul.u32 6, %s52
    %p54 = scmp.eq.s32.totalorder 0, 0
    // Predicated region
    $region18: #{tpu_custom_call.1} parent=1 // pred_check
      %p55 = pneg %p54
    $region19: #{tpu_custom_call.1} parent=1 // pred_check_branch
      %57 = sbr.rel (%p55) target = $region21
    $region20: #{tpu_custom_call.1} parent=1 // pred_region
      %vm58 = vcmask 0
      %59 = vst.msk [vmem:[#allocation7] sm:$0x1] %vm58, 0.0
    $region21: #{tpu_custom_call.1} parent=1 // pred_fallthru
      _
    %v60 = vld [vmem:[#allocation5] sm:$0xff]
    %v61 = vld [vmem:[#allocation5 + $0x8] sm:$0xff]
    %v62 = vld [vmem:[#allocation5 + $0x10] sm:$0xff]
    %v63 = vld [vmem:[#allocation5 + $0x18] sm:$0xff]
    %v64 = vld [vmem:[#allocation5 + $0x20] sm:$0xff]
    %v65 = vld [vmem:[#allocation5 + $0x28] sm:$0xff]
    %v66 = vld [vmem:[#allocation5 + $0x30] sm:$0xff]
    %v67 = vld [vmem:[#allocation5 + $0x38] sm:$0xff]
    %v68 = vld [vmem:[#allocation5 + $0x40] sm:$0xff]
    %v69 = vld [vmem:[#allocation5 + $0x48] sm:$0xff]
    %v70 = vld [vmem:[#allocation5 + $0x50] sm:$0xff]
    %v71 = vld [vmem:[#allocation5 + $0x58] sm:$0xff]
    %v72 = vld [vmem:[#allocation2] sm:$0xff]
    %v73 = vld [vmem:[#allocation2 + $0x8] sm:$0xff]
    %v74 = vld [vmem:[#allocation2 + $0x10] sm:$0xff]
    %v75 = vld [vmem:[#allocation2 + $0x18] sm:$0xff]
    %v76 = vld [vmem:[#allocation2 + $0x20] sm:$0xff]
    %v77 = vld [vmem:[#allocation2 + $0x28] sm:$0xff]
    %v78 = vld [vmem:[#allocation2 + $0x30] sm:$0xff]
    %v79 = vld [vmem:[#allocation2 + $0x38] sm:$0xff]
    %v80 = vld [vmem:[#allocation2 + $0x40] sm:$0xff]
    %v81 = vld [vmem:[#allocation2 + $0x48] sm:$0xff]
    %v82 = vld [vmem:[#allocation2 + $0x50] sm:$0xff]
    %v83 = vld [vmem:[#allocation2 + $0x58] sm:$0xff]
    %v84 = vsub.f32 %v60, %v72
    %v85 = vsub.f32 %v61, %v73
    %v86 = vsub.f32 %v62, %v74
    %v87 = vsub.f32 %v63, %v75
    %v88 = vsub.f32 %v64, %v76
    %v89 = vsub.f32 %v65, %v77
    %v90 = vsub.f32 %v66, %v78
    %v91 = vsub.f32 %v67, %v79
    %v92 = vsub.f32 %v68, %v80
    %v93 = vsub.f32 %v69, %v81
    %v94 = vsub.f32 %v70, %v82
    %v95 = vsub.f32 %v71, %v83
    %v96 = vld [vmem:[#allocation7] sm:$0x1]
    %vm109 = vcmask 1040384
    %v110 = vrot.slane %v84, 7
    %v111 = vrot.slane %v85, 7
    %v112 = vsel %vm109, %v110, %v111
    %v113 = vrot.slane %v86, 7
    %v114 = vrot.slane %v87, 7
    %v115 = vsel %vm109, %v113, %v114
    %v116 = vrot.slane %v88, 7
    %v117 = vrot.slane %v89, 7
    %v118 = vsel %vm109, %v116, %v117
    %v119 = vrot.slane %v90, 7
    %v120 = vrot.slane %v91, 7
    %v121 = vsel %vm109, %v119, %v120
    %v122 = vrot.slane %v92, 7
    %v123 = vrot.slane %v93, 7
    %v124 = vsel %vm109, %v122, %v123
    %v125 = vrot.slane %v94, 7
    %v126 = vrot.slane %v95, 7
    %v127 = vsel %vm109, %v125, %v126
    %v140 = vsel %vm109, 0.0, %v110
    %v141 = vsel %vm109, 0.0, %v113
    %v142 = vsel %vm109, 0.0, %v116
    %v143 = vsel %vm109, 0.0, %v119
    %v144 = vsel %vm109, 0.0, %v122
    %v145 = vsel %vm109, 0.0, %v125
    %vm146 = vcmask 1046528
    %v147 = vrot.slane %v84, 1
    %v148 = vrot.slane %v85, 1
    %v149 = vsel %vm146, %v147, %v148
    %v150 = vrot.slane %v86, 1
    %v151 = vrot.slane %v87, 1
    %v152 = vsel %vm146, %v150, %v151
    %v153 = vrot.slane %v88, 1
    %v154 = vrot.slane %v89, 1
    %v155 = vsel %vm146, %v153, %v154
    %v156 = vrot.slane %v90, 1
    %v157 = vrot.slane %v91, 1
    %v158 = vsel %vm146, %v156, %v157
    %v159 = vrot.slane %v92, 1
    %v160 = vrot.slane %v93, 1
    %v161 = vsel %vm146, %v159, %v160
    %v162 = vrot.slane %v94, 1
    %v163 = vrot.slane %v95, 1
    %v164 = vsel %vm146, %v162, %v163
    %v177 = vsel %vm146, %v148, 0.0
    %v178 = vsel %vm146, %v151, 0.0
    %v179 = vsel %vm146, %v154, 0.0
    %v180 = vsel %vm146, %v157, 0.0
    %v181 = vsel %vm146, %v160, 0.0
    %v182 = vsel %vm146, %v163, 0.0
    %183 = vrot.lane.b32.xlu0 %v84, 1
    %v184 = vpop.permute.xlu0 %183
    %185 = vrot.lane.b32.xlu0 %v85, 1
    %v186 = vpop.permute.xlu0 %185
    %187 = vrot.lane.b32.xlu0 %v86, 1
    %v188 = vpop.permute.xlu0 %187
    %189 = vrot.lane.b32.xlu0 %v87, 1
    %v190 = vpop.permute.xlu0 %189
    %191 = vrot.lane.b32.xlu0 %v88, 1
    %v192 = vpop.permute.xlu0 %191
    %193 = vrot.lane.b32.xlu0 %v89, 1
    %v194 = vpop.permute.xlu0 %193
    %195 = vrot.lane.b32.xlu0 %v90, 1
    %v196 = vpop.permute.xlu0 %195
    %197 = vrot.lane.b32.xlu0 %v91, 1
    %v198 = vpop.permute.xlu0 %197
    %199 = vrot.lane.b32.xlu0 %v92, 1
    %v200 = vpop.permute.xlu0 %199
    %201 = vrot.lane.b32.xlu0 %v93, 1
    %v202 = vpop.permute.xlu0 %201
    %203 = vrot.lane.b32.xlu0 %v94, 1
    %v204 = vpop.permute.xlu0 %203
    %205 = vrot.lane.b32.xlu0 %v95, 1
    %v206 = vpop.permute.xlu0 %205
    %vm219 = vcmask 7168
    %v220 = vsel %vm219, 0.0, %v184
    %v221 = vsel %vm219, 0.0, %v186
    %v222 = vsel %vm219, 0.0, %v188
    %v223 = vsel %vm219, 0.0, %v190
    %v224 = vsel %vm219, 0.0, %v192
    %v225 = vsel %vm219, 0.0, %v194
    %v226 = vsel %vm219, 0.0, %v196
    %v227 = vsel %vm219, 0.0, %v198
    %v228 = vsel %vm219, 0.0, %v200
    %v229 = vsel %vm219, 0.0, %v202
    %v230 = vsel %vm219, 0.0, %v204
    %v231 = vsel %vm219, 0.0, %v206
    %232 = vrot.lane.b32.xlu0 %v84, 127
    %v233 = vpop.permute.xlu0 %232
    %234 = vrot.lane.b32.xlu0 %v85, 127
    %v235 = vpop.permute.xlu0 %234
    %236 = vrot.lane.b32.xlu0 %v86, 127
    %v237 = vpop.permute.xlu0 %236
    %238 = vrot.lane.b32.xlu0 %v87, 127
    %v239 = vpop.permute.xlu0 %238
    %240 = vrot.lane.b32.xlu0 %v88, 127
    %v241 = vpop.permute.xlu0 %240
    %242 = vrot.lane.b32.xlu0 %v89, 127
    %v243 = vpop.permute.xlu0 %242
    %244 = vrot.lane.b32.xlu0 %v90, 127
    %v245 = vpop.permute.xlu0 %244
    %246 = vrot.lane.b32.xlu0 %v91, 127
    %v247 = vpop.permute.xlu0 %246
    %248 = vrot.lane.b32.xlu0 %v92, 127
    %v249 = vpop.permute.xlu0 %248
    %250 = vrot.lane.b32.xlu0 %v93, 127
    %v251 = vpop.permute.xlu0 %250
    %252 = vrot.lane.b32.xlu0 %v94, 127
    %v253 = vpop.permute.xlu0 %252
    %254 = vrot.lane.b32.xlu0 %v95, 127
    %v255 = vpop.permute.xlu0 %254
    %vm268 = vcmask 121856
    %v269 = vsel %vm268, %v233, 0.0
    %v270 = vsel %vm268, %v235, 0.0
    %v271 = vsel %vm268, %v237, 0.0
    %v272 = vsel %vm268, %v239, 0.0
    %v273 = vsel %vm268, %v241, 0.0
    %v274 = vsel %vm268, %v243, 0.0
    %v275 = vsel %vm268, %v245, 0.0
    %v276 = vsel %vm268, %v247, 0.0
    %v277 = vsel %vm268, %v249, 0.0
    %v278 = vsel %vm268, %v251, 0.0
    %v279 = vsel %vm268, %v253, 0.0
    %v280 = vsel %vm268, %v255, 0.0
    %v281 = vmul.f32 %v84, 4.0
    %v282 = vmul.f32 %v85, 4.0
    %v283 = vmul.f32 %v86, 4.0
    %v284 = vmul.f32 %v87, 4.0
    %v285 = vmul.f32 %v88, 4.0
    %v286 = vmul.f32 %v89, 4.0
    %v287 = vmul.f32 %v90, 4.0
    %v288 = vmul.f32 %v91, 4.0
    %v289 = vmul.f32 %v92, 4.0
    %v290 = vmul.f32 %v93, 4.0
    %v291 = vmul.f32 %v94, 4.0
    %v292 = vmul.f32 %v95, 4.0
    %v293 = vsub.f32 %v281, %v140
    %v294 = vsub.f32 %v282, %v112
    %v295 = vsub.f32 %v283, %v141
    %v296 = vsub.f32 %v284, %v115
    %v297 = vsub.f32 %v285, %v142
    %v298 = vsub.f32 %v286, %v118
    %v299 = vsub.f32 %v287, %v143
    %v300 = vsub.f32 %v288, %v121
    %v301 = vsub.f32 %v289, %v144
    %v302 = vsub.f32 %v290, %v124
    %v303 = vsub.f32 %v291, %v145
    %v304 = vsub.f32 %v292, %v127
    %v305 = vsub.f32 %v293, %v149
    %v306 = vsub.f32 %v294, %v177
    %v307 = vsub.f32 %v295, %v152
    %v308 = vsub.f32 %v296, %v178
    %v309 = vsub.f32 %v297, %v155
    %v310 = vsub.f32 %v298, %v179
    %v311 = vsub.f32 %v299, %v158
    %v312 = vsub.f32 %v300, %v180
    %v313 = vsub.f32 %v301, %v161
    %v314 = vsub.f32 %v302, %v181
    %v315 = vsub.f32 %v303, %v164
    %v316 = vsub.f32 %v304, %v182
    %v317 = vsub.f32 %v305, %v220
    %v318 = vsub.f32 %v306, %v221
    %v319 = vsub.f32 %v307, %v222
    %v320 = vsub.f32 %v308, %v223
    %v321 = vsub.f32 %v309, %v224
    %v322 = vsub.f32 %v310, %v225
    %v323 = vsub.f32 %v311, %v226
    %v324 = vsub.f32 %v312, %v227
    %v325 = vsub.f32 %v313, %v228
    %v326 = vsub.f32 %v314, %v229
    %v327 = vsub.f32 %v315, %v230
    %v328 = vsub.f32 %v316, %v231
    %v329 = vsub.f32 %v317, %v269
    %v330 = vsub.f32 %v318, %v270
    %v331 = vsub.f32 %v319, %v271
    %v332 = vsub.f32 %v320, %v272
    %v333 = vsub.f32 %v321, %v273
    %v334 = vsub.f32 %v322, %v274
    %v335 = vsub.f32 %v323, %v275
    %v336 = vsub.f32 %v324, %v276
    %v337 = vsub.f32 %v325, %v277
    %v338 = vsub.f32 %v326, %v278
    %v339 = vsub.f32 %v327, %v279
    %v340 = vsub.f32 %v328, %v280
    %v341 = vand.u32 2147483647, %v329
    %v342 = vand.u32 2147483647, %v330
    %v343 = vand.u32 2147483647, %v331
    %v344 = vand.u32 2147483647, %v332
    %v345 = vand.u32 2147483647, %v333
    %v346 = vand.u32 2147483647, %v334
    %v347 = vand.u32 2147483647, %v335
    %v348 = vand.u32 2147483647, %v336
    %v349 = vand.u32 2147483647, %v337
    %v350 = vand.u32 2147483647, %v338
    %v351 = vand.u32 2147483647, %v339
    %v352 = vand.u32 2147483647, %v340
    %vm353 = vcmask 130048
    %v354 = vsel %vm353, %v341, 0.0
    %v355 = vsel %vm353, %v342, 0.0
    %v356 = vadd.f32 %v354, %v355
    %v357 = vsel %vm353, %v343, 0.0
    %v358 = vadd.f32 %v356, %v357
    %v359 = vsel %vm353, %v344, 0.0
    %v360 = vadd.f32 %v358, %v359
    %v361 = vsel %vm353, %v345, 0.0
    %v362 = vadd.f32 %v360, %v361
    %v363 = vsel %vm353, %v346, 0.0
    %v364 = vadd.f32 %v362, %v363
    %v365 = vsel %vm353, %v347, 0.0
    %v366 = vadd.f32 %v364, %v365
    %v367 = vsel %vm353, %v348, 0.0
    %v368 = vadd.f32 %v366, %v367
    %v369 = vsel %vm353, %v349, 0.0
    %v370 = vadd.f32 %v368, %v369
    %v371 = vsel %vm353, %v350, 0.0
    %v372 = vadd.f32 %v370, %v371
    %v373 = vsel %vm353, %v351, 0.0
    %v374 = vadd.f32 %v372, %v373
    %v375 = vsel %vm353, %v352, 0.0
    %v376 = vadd.f32 %v374, %v375
    %377 = vadd.xlane.f32.xlu0 %v376
    %v378 = vpop.xlane.xlu0 %377
    %v379 = vrot.slane %v378, 4
    %v380 = vadd.f32 %v378, %v379
    %v381 = vrot.slane %v380, 2
    %v382 = vadd.f32 %v380, %v381
    %v383 = vrot.slane %v382, 1
    %v384 = vadd.f32 %v382, %v383
    %s385 = vtos %v384
    %v386 = vstv %s385
    %v387 = vadd.f32 %v96, %v386
    %vm388 = vcmask 0
    %389 = vst.msk [vmem:[#allocation7] sm:$0x1] %vm388, %v387
    // Predicated region
    $region22: #{tpu_custom_call.1} parent=1 // pred_check
      _
    $region23: #{tpu_custom_call.1} parent=1 // pred_check_branch
      %391 = sbr.rel (0) target = $region25
    $region24: #{tpu_custom_call.1} parent=1 // pred_region
      %s393 = ssub.s32 16, 16
      %394 = vsyncadd [#allocation4], %s393
      %s396 = sshll.u32 [#allocation7], 4
      %s397 = int_to_ptr.vmem [resolvable:$true] %s396
      %399 = dma.vmem_to_hbm [thread:$0]  %s397, 16, %s2, [#allocation4]
    $region25: #{tpu_custom_call.1} parent=1 // pred_fallthru
      _
    // Predicated region
    $region26: #{tpu_custom_call.1} parent=1 // pred_check
      _
    $region27: #{tpu_custom_call.1} parent=1 // pred_check_branch
      %401 = sbr.rel (0) target = $region29
    $region28: #{tpu_custom_call.1} parent=1 // pred_region
      %402 = dma.done [#allocation4], 16
    $region29: #{tpu_custom_call.1} parent=1 // pred_fallthru
      _
    %403 = vsyncpa [#allocation3], 1
    %404 = vsyncpa [#allocation6], 1
    %405 = vsyncpa [#allocation4], 1

</llo_original>
